<compile_context>
chip_gen: v6e
topology: v6e:2x2x1
jax: 0.10.0
libtpu: 0.0.40
codegen_flags: <defaults>
</compile_context>

<pallas_src>
import functools

import jax
import jax.numpy as jnp
from jax.experimental import pallas as pl
from jax.experimental.pallas import tpu as pltpu


def _round_up(x, m):
    return (x + m - 1) // m * m


# ----------------------------------------------------------------------------
# Pallas kernel: fused trunk (2x relu-Linear) + fused tanh head, one output.
# ----------------------------------------------------------------------------
def actor_kernel(x_ref, w1_ref, w2_ref, wh_ref, b_ref, out_ref):
    H = w1_ref.shape[1]          # hidden dim (static at trace time)
    Wh = wh_ref.shape[1]         # lane-padded fused-head width (multiple of 128)

    x = x_ref[...]

    # fc1 + relu
    h1 = jnp.dot(x, w1_ref[...], preferred_element_type=jnp.float32) + b_ref[0:1, :H]
    h1 = jnp.maximum(h1, 0.0)

    # fc2 + relu
    h2 = jnp.dot(h1, w2_ref[...], preferred_element_type=jnp.float32) + b_ref[1:2, :H]
    h2 = jnp.maximum(h2, 0.0)

    # fused heads ([Wp | Wb | 0]) + tanh, single lane-dense store
    z = jnp.dot(h2, wh_ref[...], preferred_element_type=jnp.float32) + b_ref[2:3, :Wh]
    out_ref[...] = jnp.tanh(z).astype(out_ref.dtype)


# ----------------------------------------------------------------------------
# Wrapper
# ----------------------------------------------------------------------------
@functools.partial(jax.jit, static_argnames=("n_actions", "block_b"))
def actor_forward(state, packed, n_actions, block_b=1024):
    """state: [B, input_dim] f32. packed: dict from pack_params()."""
    B, in_dim = state.shape
    H = packed["w1"].shape[1]
    Wh = packed["wh"].shape[1]
    Wb = packed["b"].shape[1]

    # Batch tiling: rows per block (multiple of 8), pad batch to a whole grid.
    blk = min(block_b, _round_up(B, 8))
    B_pad = _round_up(B, blk)
    if B_pad != B:
        state = jnp.pad(state, ((0, B_pad - B), (0, 0)))
    grid = (B_pad // blk,)

    flops = 2 * B_pad * (in_dim * H + H * H + H * Wh)
    bytes_accessed = 4 * (B_pad * in_dim + B_pad * Wh
                          + in_dim * H + H * H + H * Wh + 3 * Wb)

    out = pl.pallas_call(
        actor_kernel,
        out_shape=jax.ShapeDtypeStruct((B_pad, Wh), jnp.float32),
        grid=grid,
        in_specs=[
            pl.BlockSpec((blk, in_dim), lambda i: (i, 0)),   # state: tiled on batch
            pl.BlockSpec((in_dim, H), lambda i: (0, 0)),     # W1: resident
            pl.BlockSpec((H, H), lambda i: (0, 0)),          # W2: resident
            pl.BlockSpec((H, Wh), lambda i: (0, 0)),         # fused head W: resident
            pl.BlockSpec((3, Wb), lambda i: (0, 0)),         # packed biases: resident
        ],
        out_specs=pl.BlockSpec((blk, Wh), lambda i: (i, 0)),
        compiler_params=pltpu.CompilerParams(
            dimension_semantics=("parallel",)),
        cost_estimate=pl.CostEstimate(
            flops=flops,
            transcendentals=B_pad * Wh,
            bytes_accessed=bytes_accessed),
    )(state, packed["w1"], packed["w2"], packed["wh"], packed["b"])

    param_adj = out[:B, :n_actions]
    box_adj = out[:B, n_actions:n_actions + 4]
    return param_adj, box_adj


# ----------------------------------------------------------------------------
# Deterministic parameter init (mirrors nn.init.orthogonal_(gain=1), bias=0)
# ----------------------------------------------------------------------------
def orthogonal(key, shape):
    rows, cols = shape
    n = max(rows, cols)
    a = jax.random.normal(key, (n, n), dtype=jnp.float32)
    q, r = jnp.linalg.qr(a)
    d = jnp.diag(r)
    q = q * jnp.where(d >= 0, 1.0, -1.0)   # robust sign fix (no zeroed columns)
    return q[:rows, :cols]


def init_params(key, input_dim, n_actions, hidden_dim=64):
    k1, k2, k3, k4 = jax.random.split(key, 4)
    # Weights stored [in, out] (transpose of PyTorch Linear) so the kernel does x @ W.
    return {
        "w1": orthogonal(k1, (input_dim, hidden_dim)),
        "b1": jnp.zeros((hidden_dim,), jnp.float32),
        "w2": orthogonal(k2, (hidden_dim, hidden_dim)),
        "b2": jnp.zeros((hidden_dim,), jnp.float32),
        "wp": orthogonal(k3, (hidden_dim, n_actions)),
        "bp": jnp.zeros((n_actions,), jnp.float32),
        "wb": orthogonal(k4, (hidden_dim, 4)),
        "bb": jnp.zeros((4,), jnp.float32),
    }


def pack_params(p):
    """Build the fused/packed kernel parameters from the raw per-layer params."""
    H = p["w1"].shape[1]
    na = p["wp"].shape[1]
    nb = p["wb"].shape[1]
    n_head = na + nb
    Wh = _round_up(n_head, 128)                 # lane-dense fused head width

    wh = jnp.zeros((H, Wh), jnp.float32)
    wh = wh.at[:, :na].set(p["wp"])
    wh = wh.at[:, na:n_head].set(p["wb"])

    Wb = max(H, Wh)
    b = jnp.zeros((3, Wb), jnp.float32)
    b = b.at[0, :H].set(p["b1"])
    b = b.at[1, :H].set(p["b2"])
    b = b.at[2, :na].set(p["bp"])
    b = b.at[2, na:n_head].set(p["bb"])

    return {"w1": p["w1"], "w2": p["w2"], "wh": wh, "b": b}


def reference_forward(state, p):
    h1 = jax.nn.relu(state @ p["w1"] + p["b1"])
    h2 = jax.nn.relu(h1 @ p["w2"] + p["b2"])
    return jnp.tanh(h2 @ p["wp"] + p["bp"]), jnp.tanh(h2 @ p["wb"] + p["bb"])


if __name__ == "__main__":
    B, INPUT_DIM, N_ACTIONS, HIDDEN = 2, 16, 8, 64

    key = jax.random.PRNGKey(0)
    k_state, k_params = jax.random.split(key)

    state = jax.random.normal(k_state, (B, INPUT_DIM), dtype=jnp.float32)
    raw = init_params(k_params, INPUT_DIM, N_ACTIONS, HIDDEN)
    packed = pack_params(raw)

    param_adj, box_adj = actor_forward(state, packed, n_actions=N_ACTIONS)
    jax.block_until_ready((param_adj, box_adj))

    # Cross-check against a pure-JAX reference of the same math.
    ref_p, ref_b = reference_forward(state, raw)
    assert param_adj.shape == (B, N_ACTIONS)
    assert box_adj.shape == (B, 4)
    assert jnp.allclose(param_adj, ref_p, atol=1e-5)
    assert jnp.allclose(box_adj, ref_b, atol=1e-5)

    print("KERNEL_OK")
</pallas_src>

<mosaic_0001>
module attributes {stable_mosaic.version = 11 : i64} {
  func.func @actor_kernel(%arg0: i32, %arg1: memref<8x16xf32, #tpu.memory_space<vmem>>, %arg2: memref<16x64xf32, #tpu.memory_space<vmem>>, %arg3: memref<64x64xf32, #tpu.memory_space<vmem>>, %arg4: memref<64x128xf32, #tpu.memory_space<vmem>>, %arg5: memref<3x128xf32, #tpu.memory_space<vmem>>, %arg6: memref<8x128xf32, #tpu.memory_space<vmem>>) attributes {dimension_semantics = [#tpu.dimension_semantics<parallel>], iteration_bounds = array<i64: 1>, scalar_prefetch = 0 : i64, scratch_operands = 0 : i64, tpu.core_type = #tpu.core_type<tc>, window_params = [{transform_indices = @transform_0, window_bounds = array<i64: 8, 16>}, {pipeline_mode = #tpu.pipeline_mode<synchronous>, transform_indices = @transform_1, window_bounds = array<i64: 16, 64>}, {pipeline_mode = #tpu.pipeline_mode<synchronous>, transform_indices = @transform_2, window_bounds = array<i64: 64, 64>}, {pipeline_mode = #tpu.pipeline_mode<synchronous>, transform_indices = @transform_3, window_bounds = array<i64: 64, 128>}, {pipeline_mode = #tpu.pipeline_mode<synchronous>, transform_indices = @transform_4, window_bounds = array<i64: 3, 128>}, {transform_indices = @transform_5, window_bounds = array<i64: 8, 128>}]} {
    %c0 = arith.constant 0 : index
    %c0_0 = arith.constant 0 : index
    %0 = vector.load %arg1[%c0, %c0_0] : memref<8x16xf32, #tpu.memory_space<vmem>>, vector<8x16xf32>
    %c0_1 = arith.constant 0 : index
    %c0_2 = arith.constant 0 : index
    %1 = vector.load %arg2[%c0_1, %c0_2] : memref<16x64xf32, #tpu.memory_space<vmem>>, vector<16x64xf32>
    %cst = arith.constant dense<0.000000e+00> : vector<8x64xf32>
    %2 = tpu.matmul %0, %1, %cst {dimension_numbers = #tpu.dot_dimension_numbers<[1], [0], [0], [1], [0, 0, 1, 1], [], []>} : vector<8x16xf32>, vector<16x64xf32>, vector<8x64xf32> -> vector<8x64xf32>
    %c0_3 = arith.constant 0 : index
    %c0_4 = arith.constant 0 : index
    %3 = vector.load %arg5[%c0_3, %c0_4] : memref<3x128xf32, #tpu.memory_space<vmem>>, vector<1x64xf32>
    %4 = vector.broadcast %3 : vector<1x64xf32> to vector<8x64xf32>
    %5 = arith.addf %2, %4 : vector<8x64xf32>
    %cst_5 = arith.constant 0.000000e+00 : f32
    %6 = vector.broadcast %cst_5 : f32 to vector<8x64xf32>
    %7 = arith.maximumf %5, %6 : vector<8x64xf32>
    %c0_6 = arith.constant 0 : index
    %c0_7 = arith.constant 0 : index
    %8 = vector.load %arg3[%c0_6, %c0_7] : memref<64x64xf32, #tpu.memory_space<vmem>>, vector<64x64xf32>
    %cst_8 = arith.constant dense<0.000000e+00> : vector<8x64xf32>
    %9 = tpu.matmul %7, %8, %cst_8 {dimension_numbers = #tpu.dot_dimension_numbers<[1], [0], [0], [1], [0, 0, 1, 1], [], []>} : vector<8x64xf32>, vector<64x64xf32>, vector<8x64xf32> -> vector<8x64xf32>
    %c1 = arith.constant 1 : index
    %c0_9 = arith.constant 0 : index
    %10 = vector.load %arg5[%c1, %c0_9] : memref<3x128xf32, #tpu.memory_space<vmem>>, vector<1x64xf32>
    %11 = vector.broadcast %10 : vector<1x64xf32> to vector<8x64xf32>
    %12 = arith.addf %9, %11 : vector<8x64xf32>
    %cst_10 = arith.constant 0.000000e+00 : f32
    %13 = vector.broadcast %cst_10 : f32 to vector<8x64xf32>
    %14 = arith.maximumf %12, %13 : vector<8x64xf32>
    %c0_11 = arith.constant 0 : index
    %c0_12 = arith.constant 0 : index
    %15 = vector.load %arg4[%c0_11, %c0_12] : memref<64x128xf32, #tpu.memory_space<vmem>>, vector<64x128xf32>
    %cst_13 = arith.constant dense<0.000000e+00> : vector<8x128xf32>
    %16 = tpu.matmul %14, %15, %cst_13 {dimension_numbers = #tpu.dot_dimension_numbers<[1], [0], [0], [1], [0, 0, 1, 1], [], []>} : vector<8x64xf32>, vector<64x128xf32>, vector<8x128xf32> -> vector<8x128xf32>
    %c2 = arith.constant 2 : index
    %c0_14 = arith.constant 0 : index
    %17 = vector.load %arg5[%c2, %c0_14] : memref<3x128xf32, #tpu.memory_space<vmem>>, vector<1x128xf32>
    %18 = vector.broadcast %17 : vector<1x128xf32> to vector<8x128xf32>
    %19 = arith.addf %16, %18 : vector<8x128xf32>
    %20 = math.tanh %19 : vector<8x128xf32>
    %c0_15 = arith.constant 0 : index
    %c0_16 = arith.constant 0 : index
    %21 = vector.load %arg6[%c0_15, %c0_16] : memref<8x128xf32, #tpu.memory_space<vmem>>, vector<8x128xf32>
    tpu.vector_store %arg6[%c0_15, %c0_16], %20 {strides = array<i32>} : memref<8x128xf32, #tpu.memory_space<vmem>>, vector<8x128xf32>,
    return
  }
  func.func @transform_0(%arg0: i32) -> (i32, i32) {
    %c0_i32 = arith.constant 0 : i32
    %c0_i32_0 = arith.constant 0 : i32
    return %arg0, %c0_i32 : i32, i32
  }
  func.func @transform_1(%arg0: i32) -> (i32, i32) {
    %c0_i32 = arith.constant 0 : i32
    %c0_i32_0 = arith.constant 0 : i32
    %c0_i32_1 = arith.constant 0 : i32
    return %c0_i32, %c0_i32_0 : i32, i32
  }
  func.func @transform_2(%arg0: i32) -> (i32, i32) {
    %c0_i32 = arith.constant 0 : i32
    %c0_i32_0 = arith.constant 0 : i32
    %c0_i32_1 = arith.constant 0 : i32
    return %c0_i32, %c0_i32_0 : i32, i32
  }
  func.func @transform_3(%arg0: i32) -> (i32, i32) {
    %c0_i32 = arith.constant 0 : i32
    %c0_i32_0 = arith.constant 0 : i32
    %c0_i32_1 = arith.constant 0 : i32
    return %c0_i32, %c0_i32_0 : i32, i32
  }
  func.func @transform_4(%arg0: i32) -> (i32, i32) {
    %c0_i32 = arith.constant 0 : i32
    %c0_i32_0 = arith.constant 0 : i32
    %c0_i32_1 = arith.constant 0 : i32
    return %c0_i32, %c0_i32_0 : i32, i32
  }
  func.func @transform_5(%arg0: i32) -> (i32, i32) {
    %c0_i32 = arith.constant 0 : i32
    %c0_i32_0 = arith.constant 0 : i32
    return %arg0, %c0_i32 : i32, i32
  }
}

</mosaic_0001>

<llo_original>
// kernel: actor_forward.1
$region0: #{actor_forward.1}
  #allocation0 [shape = 'u32[]', space=smem, size = 0x4, offset = 0x4, fixed_abs, tag = 'smem constant byte address 0x4 - core index']
  #allocation1 [shape = 'u32[144,128]{1,0:T(1,128)}', space=vmem, size = 0x12000, scoped, tag = 'internal scratch']
  %s0 = inlined_call_operand.vmem [shape: f32[8,16], index: 0, kind: input, shape index: {}]
  %s1 = inlined_call_operand.hbm [shape: f32[16,64], index: 1, kind: input, shape index: {}]
  %s2 = inlined_call_operand.hbm [shape: f32[64,64], index: 2, kind: input, shape index: {}]
  %s3 = inlined_call_operand.hbm [shape: f32[64,128], index: 3, kind: input, shape index: {}]
  %s4 = inlined_call_operand.vmem [shape: f32[3,128], index: 4, kind: input, shape index: {}]
  %s5 = inlined_call_operand.vmem [shape: f32[8,128], index: 5, kind: output, shape index: {}]
  %s6 = sld [smem:[#allocation0]]
  $region42: #{actor_forward.1} parent=0
    _
  %s8 = ssub.s32 1, %s6
  %s9 = scalar_select 0, %s8, %s6
  $region1: #{actor_forward.1} parent=0
    #allocation2 [shape = 'u8[8192]{0}', space=vmem, size = 0x2000, scoped, tag = 'input window, operand 1, single buffered']
    #allocation3 [shape = 's32[1]{0}', space=sflag, size = 0x4, scoped, tag = 'scoped memory for actor_forward.1']
    #allocation4 [shape = 'u8[32768]{0}', space=vmem, size = 0x8000, scoped, tag = 'input window, operand 2, single buffered']
    #allocation5 [shape = 's32[1]{0}', space=sflag, size = 0x4, scoped, tag = 'scoped memory for actor_forward.1']
    #allocation6 [shape = 'u8[32768]{0}', space=vmem, size = 0x8000, scoped, tag = 'input window, operand 3, single buffered']
    %10 = vsyncpa [#allocation3], 0
    %11 = vsyncpa [#allocation5], 0
    // Predicated region
    $region2: #{actor_forward.1} parent=1 // pred_check
      _
    $region3: #{actor_forward.1} parent=1 // pred_check_branch
      %13 = sbr.rel (0) target = $region5
    $region4: #{actor_forward.1} parent=1 // pred_region
      _
    $region5: #{actor_forward.1} parent=1 // pred_fallthru
      _
    // Predicated region
    $region6: #{actor_forward.1} parent=1 // pred_check
      _
    $region7: #{actor_forward.1} parent=1 // pred_check_branch
      %15 = sbr.rel (0) target = $region9
    $region8: #{actor_forward.1} parent=1 // pred_region
      %s17 = ssub.s32 256, 256
      %18 = vsyncadd [#allocation3], %s17
      %s19 = sshll.u32 [#allocation2], 4
      %s20 = int_to_ptr.vmem [resolvable:$true] %s19
      %25 = dma.hbm_to_vmem [thread:$0]  %s1, 256, %s20, [#allocation3], 128, 128, 8
    $region9: #{actor_forward.1} parent=1 // pred_fallthru
      _
    // Predicated region
    $region10: #{actor_forward.1} parent=1 // pred_check
      _
    $region11: #{actor_forward.1} parent=1 // pred_check_branch
      %27 = sbr.rel (0) target = $region13
    $region12: #{actor_forward.1} parent=1 // pred_region
      %s29 = ssub.s32 1024, 1024
      %30 = vsyncadd [#allocation5], %s29
      %s31 = sshll.u32 [#allocation4], 4
      %s32 = int_to_ptr.vmem [resolvable:$true] %s31
      %37 = dma.hbm_to_vmem [thread:$0]  %s2, 1024, %s32, [#allocation5], 128, 128, 8
    $region13: #{actor_forward.1} parent=1 // pred_fallthru
      _
    // Predicated region
    $region14: #{actor_forward.1} parent=1 // pred_check
      _
    $region15: #{actor_forward.1} parent=1 // pred_check_branch
      %39 = sbr.rel (0) target = $region17
    $region16: #{actor_forward.1} parent=1 // pred_region
      %s41 = ssub.s32 1024, 1024
      %42 = vsyncadd [#allocation5], %s41
      %s43 = sshll.u32 [#allocation6], 4
      %s44 = int_to_ptr.vmem [resolvable:$true] %s43
      %49 = dma.hbm_to_vmem [thread:$0]  %s3, 1024, %s44, [#allocation5], 128, 128, 8
    $region17: #{actor_forward.1} parent=1 // pred_fallthru
      _
    // Predicated region
    $region18: #{actor_forward.1} parent=1 // pred_check
      _
    $region19: #{actor_forward.1} parent=1 // pred_check_branch
      %51 = sbr.rel (0) target = $region21
    $region20: #{actor_forward.1} parent=1 // pred_region
      _
    $region21: #{actor_forward.1} parent=1 // pred_fallthru
      _
    // Predicated region
    $region22: #{actor_forward.1} parent=1 // pred_check
      _
    $region23: #{actor_forward.1} parent=1 // pred_check_branch
      %53 = sbr.rel (0) target = $region25
    $region24: #{actor_forward.1} parent=1 // pred_region
      %54 = dma.done [#allocation3], 256
    $region25: #{actor_forward.1} parent=1 // pred_fallthru
      _
    // Predicated region
    $region26: #{actor_forward.1} parent=1 // pred_check
      _
    $region27: #{actor_forward.1} parent=1 // pred_check_branch
      %56 = sbr.rel (0) target = $region29
    $region28: #{actor_forward.1} parent=1 // pred_region
      %57 = dma.done [#allocation5], 1024
    $region29: #{actor_forward.1} parent=1 // pred_fallthru
      _
    // Predicated region
    $region30: #{actor_forward.1} parent=1 // pred_check
      _
    $region31: #{actor_forward.1} parent=1 // pred_check_branch
      %59 = sbr.rel (0) target = $region33
    $region32: #{actor_forward.1} parent=1 // pred_region
      %60 = dma.done [#allocation5], 1024
    $region33: #{actor_forward.1} parent=1 // pred_fallthru
      _
    %v61 = vld [vmem:[%s0] sm:$0xff]
    %v62 = vld [vmem:[#allocation2] sm:$0xff]
    %v63 = vld [vmem:[#allocation2 + $0x8] sm:$0xff]
    %v64 = vld [vmem:[%s4] sm:$0x1]
    %v65 = vlaneseq
    %v66 = vshrl.u32 %v65, 7
    %v67 = vsub.s32 0, %v66
    %v68 = vrot.slane %v64, %v67
    %vm69 = vcmask 130048
    %v71 = vsel %vm69, %v61, 0
    %73 = vmatprep.subr.mxu0 0.0
    %74 = vmatpush1.msra.mxu0 0.0
    %75 = vmatprep.subr.mxu0 0.0
    %76 = vmatpush1.msra.mxu0 0.0
    %77 = vmatprep.subr.mxu0 0.0
    %78 = vmatpush1.msra.mxu0 0.0
    %79 = vmatprep.subr.mxu0 0.0
    %80 = vmatpush1.msra.mxu0 0.0
    %81 = vmatprep.subr.mxu0 0.0
    %82 = vmatpush1.msra.mxu0 0.0
    %83 = vmatprep.subr.mxu0 0.0
    %84 = vmatpush1.msra.mxu0 0.0
    %85 = vmatprep.subr.mxu0 0.0
    %86 = vmatpush1.msra.mxu0 0.0
    %87 = vmatprep.subr.mxu0 0.0
    %88 = vmatpush1.msra.mxu0 0.0
    %89 = vmatprep.subr.mxu0 0.0
    %90 = vmatpush1.msra.mxu0 0.0
    %91 = vmatprep.subr.mxu0 0.0
    %92 = vmatpush1.msra.mxu0 0.0
    %93 = vmatprep.subr.mxu0 0.0
    %94 = vmatpush1.msra.mxu0 0.0
    %95 = vmatprep.subr.mxu0 0.0
    %96 = vmatpush1.msra.mxu0 0.0
    %97 = vmatprep.subr.mxu0 0.0
    %98 = vmatpush1.msra.mxu0 0.0
    %99 = vmatprep.subr.mxu0 0.0
    %100 = vmatpush1.msra.mxu0 0.0
    %101 = vmatprep.subr.mxu0 0.0
    %102 = vmatpush1.msra.mxu0 %v63
    %103 = vmatprep.subr.mxu0 0.0
    %104 = vmatpush1.msra.mxu0 %v62
    %105 = vmatprep.subr.mxu0 0.0
    %106 = vmatpush2.msra.mxu0 0.0
    %107 = vmatprep.subr.mxu0 0.0
    %108 = vmatpush2.msra.mxu0 0.0
    %109 = vmatprep.subr.mxu0 0.0
    %110 = vmatpush2.msra.mxu0 0.0
    %111 = vmatprep.subr.mxu0 0.0
    %112 = vmatpush2.msra.mxu0 0.0
    %113 = vmatprep.subr.mxu0 0.0
    %114 = vmatpush2.msra.mxu0 0.0
    %115 = vmatprep.subr.mxu0 0.0
    %116 = vmatpush2.msra.mxu0 0.0
    %117 = vmatprep.subr.mxu0 0.0
    %118 = vmatpush2.msra.mxu0 0.0
    %119 = vmatprep.subr.mxu0 0.0
    %120 = vmatpush2.msra.mxu0 0.0
    %121 = vmatprep.subr.mxu0 0.0
    %122 = vmatpush2.msra.mxu0 0.0
    %123 = vmatprep.subr.mxu0 0.0
    %124 = vmatpush2.msra.mxu0 0.0
    %125 = vmatprep.subr.mxu0 0.0
    %126 = vmatpush2.msra.mxu0 0.0
    %127 = vmatprep.subr.mxu0 0.0
    %128 = vmatpush2.msra.mxu0 0.0
    %129 = vmatprep.subr.mxu0 0.0
    %130 = vmatpush2.msra.mxu0 0.0
    %131 = vmatprep.subr.mxu0 0.0
    %132 = vmatpush2.msra.mxu0 0.0
    %133 = vmatprep.subr.mxu0 0.0
    %134 = vmatpush2.msra.mxu0 0.0
    %135 = vmatprep.subr.mxu0 0.0
    %136 = vmatpush2.msra.mxu0 0.0
    %137 = vmatprep.mubr.f32.mxu0 0.0
    %138 = vmatmul.mubr.f32.gmra.mxu0 %v71
    %v139 = vpop.f32.mrf.mxu0
    %v140 = vadd.f32 %v68, %v139
    %v141 = vpop.f32.mrf.mxu0
    %142 = vdwg.mxu0
    %v143 = vmax.f32 %v140, 0.0
    %v144 = vld [vmem:[#allocation4] sm:$0xff]
    %v145 = vld [vmem:[#allocation4 + $0x8] sm:$0xff]
    %v146 = vld [vmem:[#allocation4 + $0x10] sm:$0xff]
    %v147 = vld [vmem:[#allocation4 + $0x18] sm:$0xff]
    %v148 = vld [vmem:[#allocation4 + $0x20] sm:$0xff]
    %v149 = vld [vmem:[#allocation4 + $0x28] sm:$0xff]
    %v150 = vld [vmem:[#allocation4 + $0x30] sm:$0xff]
    %v151 = vld [vmem:[#allocation4 + $0x38] sm:$0xff]
    %v152 = vld [vmem:[%s4 + $0x1] sm:$0x1]
    %v153 = vlaneseq
    %v154 = vshrl.u32 %v153, 7
    %v155 = vsub.s32 0, %v154
    %v156 = vrot.slane %v152, %v155
    %vm157 = vcmask 523264
    %v159 = vsel %vm157, %v143, 0
    %161 = vmatprep.subr.mxu0 0.0
    %162 = vmatpush1.msra.mxu0 0.0
    %163 = vmatprep.subr.mxu0 0.0
    %164 = vmatpush1.msra.mxu0 0.0
    %165 = vmatprep.subr.mxu0 0.0
    %166 = vmatpush1.msra.mxu0 0.0
    %167 = vmatprep.subr.mxu0 0.0
    %168 = vmatpush1.msra.mxu0 0.0
    %169 = vmatprep.subr.mxu0 0.0
    %170 = vmatpush1.msra.mxu0 0.0
    %171 = vmatprep.subr.mxu0 0.0
    %172 = vmatpush1.msra.mxu0 0.0
    %173 = vmatprep.subr.mxu0 0.0
    %174 = vmatpush1.msra.mxu0 0.0
    %175 = vmatprep.subr.mxu0 0.0
    %176 = vmatpush1.msra.mxu0 0.0
    %177 = vmatprep.subr.mxu0 0.0
    %178 = vmatpush1.msra.mxu0 %v151
    %179 = vmatprep.subr.mxu0 0.0
    %180 = vmatpush1.msra.mxu0 %v150
    %181 = vmatprep.subr.mxu0 0.0
    %182 = vmatpush1.msra.mxu0 %v149
    %183 = vmatprep.subr.mxu0 0.0
    %184 = vmatpush1.msra.mxu0 %v148
    %185 = vmatprep.subr.mxu0 0.0
    %186 = vmatpush1.msra.mxu0 %v147
    %187 = vmatprep.subr.mxu0 0.0
    %188 = vmatpush1.msra.mxu0 %v146
    %189 = vmatprep.subr.mxu0 0.0
    %190 = vmatpush1.msra.mxu0 %v145
    %191 = vmatprep.subr.mxu0 0.0
    %192 = vmatpush1.msra.mxu0 %v144
    %193 = vmatprep.subr.mxu0 0.0
    %194 = vmatpush2.msra.mxu0 0.0
    %195 = vmatprep.subr.mxu0 0.0
    %196 = vmatpush2.msra.mxu0 0.0
    %197 = vmatprep.subr.mxu0 0.0
    %198 = vmatpush2.msra.mxu0 0.0
    %199 = vmatprep.subr.mxu0 0.0
    %200 = vmatpush2.msra.mxu0 0.0
    %201 = vmatprep.subr.mxu0 0.0
    %202 = vmatpush2.msra.mxu0 0.0
    %203 = vmatprep.subr.mxu0 0.0
    %204 = vmatpush2.msra.mxu0 0.0
    %205 = vmatprep.subr.mxu0 0.0
    %206 = vmatpush2.msra.mxu0 0.0
    %207 = vmatprep.subr.mxu0 0.0
    %208 = vmatpush2.msra.mxu0 0.0
    %209 = vmatprep.subr.mxu0 0.0
    %210 = vmatpush2.msra.mxu0 0.0
    %211 = vmatprep.subr.mxu0 0.0
    %212 = vmatpush2.msra.mxu0 0.0
    %213 = vmatprep.subr.mxu0 0.0
    %214 = vmatpush2.msra.mxu0 0.0
    %215 = vmatprep.subr.mxu0 0.0
    %216 = vmatpush2.msra.mxu0 0.0
    %217 = vmatprep.subr.mxu0 0.0
    %218 = vmatpush2.msra.mxu0 0.0
    %219 = vmatprep.subr.mxu0 0.0
    %220 = vmatpush2.msra.mxu0 0.0
    %221 = vmatprep.subr.mxu0 0.0
    %222 = vmatpush2.msra.mxu0 0.0
    %223 = vmatprep.subr.mxu0 0.0
    %224 = vmatpush2.msra.mxu0 0.0
    %225 = vmatprep.mubr.f32.mxu0 0.0
    %226 = vmatmul.mubr.f32.gmra.mxu0 %v159
    %v227 = vpop.f32.mrf.mxu0
    %v228 = vadd.f32 %v156, %v227
    %v229 = vpop.f32.mrf.mxu0
    %230 = vdwg.mxu0
    %v231 = vmax.f32 %v228, 0.0
    %v232 = vld [vmem:[#allocation6] sm:$0xff]
    %v233 = vld [vmem:[#allocation6 + $0x8] sm:$0xff]
    %v234 = vld [vmem:[#allocation6 + $0x10] sm:$0xff]
    %v235 = vld [vmem:[#allocation6 + $0x18] sm:$0xff]
    %v236 = vld [vmem:[#allocation6 + $0x20] sm:$0xff]
    %v237 = vld [vmem:[#allocation6 + $0x28] sm:$0xff]
    %v238 = vld [vmem:[#allocation6 + $0x30] sm:$0xff]
    %v239 = vld [vmem:[#allocation6 + $0x38] sm:$0xff]
    %v240 = vld [vmem:[%s4 + $0x2] sm:$0x1]
    %v241 = vlaneseq
    %v242 = vshrl.u32 %v241, 7
    %v243 = vsub.s32 0, %v242
    %v244 = vrot.slane %v240, %v243
    %v246 = vsel %vm157, %v231, 0
    %248 = vmatprep.subr.mxu0 0.0
    %249 = vmatpush1.msra.mxu0 0.0
    %250 = vmatprep.subr.mxu0 0.0
    %251 = vmatpush1.msra.mxu0 0.0
    %252 = vmatprep.subr.mxu0 0.0
    %253 = vmatpush1.msra.mxu0 0.0
    %254 = vmatprep.subr.mxu0 0.0
    %255 = vmatpush1.msra.mxu0 0.0
    %256 = vmatprep.subr.mxu0 0.0
    %257 = vmatpush1.msra.mxu0 0.0
    %258 = vmatprep.subr.mxu0 0.0
    %259 = vmatpush1.msra.mxu0 0.0
    %260 = vmatprep.subr.mxu0 0.0
    %261 = vmatpush1.msra.mxu0 0.0
    %262 = vmatprep.subr.mxu0 0.0
    %263 = vmatpush1.msra.mxu0 0.0
    %264 = vmatprep.subr.mxu0 0.0
    %265 = vmatpush1.msra.mxu0 %v239
    %266 = vmatprep.subr.mxu0 0.0
    %267 = vmatpush1.msra.mxu0 %v238
    %268 = vmatprep.subr.mxu0 0.0
    %269 = vmatpush1.msra.mxu0 %v237
    %270 = vmatprep.subr.mxu0 0.0
    %271 = vmatpush1.msra.mxu0 %v236
    %272 = vmatprep.subr.mxu0 0.0
    %273 = vmatpush1.msra.mxu0 %v235
    %274 = vmatprep.subr.mxu0 0.0
    %275 = vmatpush1.msra.mxu0 %v234
    %276 = vmatprep.subr.mxu0 0.0
    %277 = vmatpush1.msra.mxu0 %v233
    %278 = vmatprep.subr.mxu0 0.0
    %279 = vmatpush1.msra.mxu0 %v232
    %280 = vmatprep.subr.mxu0 0.0
    %281 = vmatpush2.msra.mxu0 0.0
    %282 = vmatprep.subr.mxu0 0.0
    %283 = vmatpush2.msra.mxu0 0.0
    %284 = vmatprep.subr.mxu0 0.0
    %285 = vmatpush2.msra.mxu0 0.0
    %286 = vmatprep.subr.mxu0 0.0
    %287 = vmatpush2.msra.mxu0 0.0
    %288 = vmatprep.subr.mxu0 0.0
    %289 = vmatpush2.msra.mxu0 0.0
    %290 = vmatprep.subr.mxu0 0.0
    %291 = vmatpush2.msra.mxu0 0.0
    %292 = vmatprep.subr.mxu0 0.0
    %293 = vmatpush2.msra.mxu0 0.0
    %294 = vmatprep.subr.mxu0 0.0
    %295 = vmatpush2.msra.mxu0 0.0
    %296 = vmatprep.subr.mxu0 0.0
    %297 = vmatpush2.msra.mxu0 0.0
    %298 = vmatprep.subr.mxu0 0.0
    %299 = vmatpush2.msra.mxu0 0.0
    %300 = vmatprep.subr.mxu0 0.0
    %301 = vmatpush2.msra.mxu0 0.0
    %302 = vmatprep.subr.mxu0 0.0
    %303 = vmatpush2.msra.mxu0 0.0
    %304 = vmatprep.subr.mxu0 0.0
    %305 = vmatpush2.msra.mxu0 0.0
    %306 = vmatprep.subr.mxu0 0.0
    %307 = vmatpush2.msra.mxu0 0.0
    %308 = vmatprep.subr.mxu0 0.0
    %309 = vmatpush2.msra.mxu0 0.0
    %310 = vmatprep.subr.mxu0 0.0
    %311 = vmatpush2.msra.mxu0 0.0
    %312 = vmatprep.mubr.f32.mxu0 0.0
    %313 = vmatmul.mubr.f32.gmra.mxu0 %v246
    %v314 = vpop.f32.mrf.mxu0
    %v315 = vadd.f32 %v244, %v314
    %v316 = vpop.f32.mrf.mxu0
    %317 = vdwg.mxu0
    %v318 = vtanh.pop %v315
    %319 = vst [vmem:[%s5] sm:$0xff] %v318
    // Predicated region
    $region34: #{actor_forward.1} parent=1 // pred_check
      _
    $region35: #{actor_forward.1} parent=1 // pred_check_branch
      %321 = sbr.rel (0) target = $region37
    $region36: #{actor_forward.1} parent=1 // pred_region
      _
    $region37: #{actor_forward.1} parent=1 // pred_fallthru
      _
    // Predicated region
    $region38: #{actor_forward.1} parent=1 // pred_check
      _
    $region39: #{actor_forward.1} parent=1 // pred_check_branch
      %323 = sbr.rel (0) target = $region41
    $region40: #{actor_forward.1} parent=1 // pred_region
      _
    $region41: #{actor_forward.1} parent=1 // pred_fallthru
      _
    %324 = vsyncpa [#allocation3], 1
    %325 = vsyncpa [#allocation5], 1

</llo_original>
